<compile_context>
chip_gen: v7x
topology: tpu7x:2x2x1
jax: 0.10.0
libtpu: 0.0.40
codegen_flags: <defaults>
</compile_context>

<pallas_src>
import jax
import jax.numpy as jnp
import numpy as np
from jax.experimental import pallas as pl
from jax.experimental.pallas import tpu as pltpu


def _round_up(x, m):
    return ((x + m - 1) // m) * m


def _linear_kernel(x_ref, w_ref, b_ref, o_ref, acc_ref):
    """One (tm, tn) output tile, reduced over the k grid axis.

    x_ref:   (tm, tk)  selected input features
    w_ref:   (tk, tn)  weight, pre-transposed to (in, out)
    b_ref:   (1, tn)   bias
    o_ref:   (tm, tn)  output tile (lane-dense: tn is a multiple of 128)
    acc_ref: (tm, tn)  f32 accumulator scratch, persists across the k axis
    """
    k = pl.program_id(2)

    @pl.when(k == 0)
    def _():
        acc_ref[...] = jnp.zeros_like(acc_ref)

    acc_ref[...] += jnp.dot(x_ref[...], w_ref[...],
                            preferred_element_type=jnp.float32)

    @pl.when(k == pl.num_programs(2) - 1)
    def _():
        o_ref[...] = (acc_ref[...] + b_ref[...].astype(jnp.float32)).astype(o_ref.dtype)


def condense_linear_forward(x, params, *, tm=128, tn=128, tk=256):
    """x: (batch, in_features_full)  ->  (batch, out_features)."""
    index = params["index"]          # (in_sel,)
    weight = params["weight"]        # (out_features, in_sel)  -- torch nn.Linear layout
    bias = params["bias"]            # (out_features,)

    # --- glue: torch.index_select(x, 1, index) (single HBM gather pass) ---
    x_sel = jnp.take(x, index, axis=1)                   # (M, K)

    M, K = x_sel.shape
    O, Kw = weight.shape
    assert K == Kw, (K, Kw)

    wt = jnp.transpose(weight)                           # (K, O): kernel computes x @ W^T
    b = bias.reshape(1, O).astype(x.dtype)

    # Tile sizes clipped to the (padded) problem; output tiles stay lane-dense (tn mult of 128).
    tm = min(tm, _round_up(M, 8))
    tk = min(tk, _round_up(K, 128))
    tn = min(tn, _round_up(O, 128))

    Mp, Kp, Np = _round_up(M, tm), _round_up(K, tk), _round_up(O, tn)

    x_p = jnp.pad(x_sel, ((0, Mp - M), (0, Kp - K)))
    w_p = jnp.pad(wt, ((0, Kp - K), (0, Np - O)))
    b_p = jnp.pad(b, ((0, 0), (0, Np - O)))

    out = pl.pallas_call(
        _linear_kernel,
        out_shape=jax.ShapeDtypeStruct((Mp, Np), x.dtype),
        grid_spec=pltpu.PrefetchScalarGridSpec(
            num_scalar_prefetch=0,
            grid=(Mp // tm, Np // tn, Kp // tk),
            in_specs=[
                pl.BlockSpec((tm, tk), lambda i, j, k: (i, k)),
                pl.BlockSpec((tk, tn), lambda i, j, k: (k, j)),
                pl.BlockSpec((1, tn), lambda i, j, k: (0, j)),
            ],
            out_specs=pl.BlockSpec((tm, tn), lambda i, j, k: (i, j)),
            scratch_shapes=[pltpu.VMEM((tm, tn), jnp.float32)],
        ),
        compiler_params=pltpu.CompilerParams(
            dimension_semantics=("parallel", "parallel", "arbitrary")),
    )(x_p, w_p, b_p)

    return out[:M, :O]


def reference(x, params):
    """Pure-JAX mirror of the PyTorch forward: index_select -> Linear."""
    x_sel = jnp.take(x, params["index"], axis=1)
    return x_sel @ params["weight"].T + params["bias"]


if __name__ == "__main__":
    # CondenseLinear(in_features=256, out_features=256, drop_rate=0.5)
    in_features_full = 256
    drop_rate = 0.5
    in_sel = int(in_features_full * drop_rate)   # 128 selected features
    out_features = 256
    batch = 16

    key = jax.random.PRNGKey(0)
    k1, k2, k3, k4 = jax.random.split(key, 4)
    x = jax.random.normal(k1, (batch, in_features_full), jnp.float32)
    weight = 0.1 * jax.random.normal(k2, (out_features, in_sel), jnp.float32)
    bias = 0.1 * jax.random.normal(k3, (out_features,), jnp.float32)
    # The torch `index` buffer is uninitialized at construction; use a deterministic selection.
    index = jax.random.randint(k4, (in_sel,), 0, in_features_full, dtype=jnp.int32)

    params = dict(index=index, weight=weight, bias=bias)

    out = jax.block_until_ready(condense_linear_forward(x, params))

    ref = reference(x, params)
    assert out.shape == ref.shape == (batch, out_features)
    np.testing.assert_allclose(np.asarray(out), np.asarray(ref), atol=1e-3, rtol=1e-3)
    print("KERNEL_OK")
</pallas_src>

<mosaic_0001>
module attributes {stable_mosaic.version = 11 : i64} {
  func.func @_linear_kernel(%arg0: i32, %arg1: i32, %arg2: i32, %arg3: memref<16x128xf32, #tpu.memory_space<vmem>>, %arg4: memref<128x128xf32, #tpu.memory_space<vmem>>, %arg5: memref<1x128xf32, #tpu.memory_space<vmem>>, %arg6: memref<16x128xf32, #tpu.memory_space<vmem>>, %arg7: memref<16x128xf32, #tpu.memory_space<vmem>>) attributes {dimension_semantics = [#tpu.dimension_semantics<parallel>, #tpu.dimension_semantics<parallel>, #tpu.dimension_semantics<arbitrary>], iteration_bounds = array<i64: 1, 2, 1>, scalar_prefetch = 0 : i64, scratch_operands = 1 : i64, tpu.core_type = #tpu.core_type<tc>, window_params = [{transform_indices = @transform_0, window_bounds = array<i64: 16, 128>}, {transform_indices = @transform_1, window_bounds = array<i64: 128, 128>}, {transform_indices = @transform_2, window_bounds = array<i64: 1, 128>}, {transform_indices = @transform_3, window_bounds = array<i64: 16, 128>}]} {
    %c0_i32 = arith.constant 0 : i32
    %0 = arith.cmpi eq, %arg2, %c0_i32 : i32
    %1 = arith.extui %0 : i1 to i32
    %c0_i32_0 = arith.constant 0 : i32
    %2 = arith.cmpi ne, %1, %c0_i32_0 : i32
    scf.if %2 {
      %cst_10 = arith.constant 0.000000e+00 : f32
      %12 = vector.broadcast %cst_10 : f32 to vector<16x128xf32>
      %c0_11 = arith.constant 0 : index
      %c0_12 = arith.constant 0 : index
      %13 = vector.load %arg7[%c0_11, %c0_12] : memref<16x128xf32, #tpu.memory_space<vmem>>, vector<16x128xf32>
      tpu.vector_store %arg7[%c0_11, %c0_12], %12 {strides = array<i32>} : memref<16x128xf32, #tpu.memory_space<vmem>>, vector<16x128xf32>,
    } else {
    }
    %c0 = arith.constant 0 : index
    %c0_1 = arith.constant 0 : index
    %3 = vector.load %arg7[%c0, %c0_1] : memref<16x128xf32, #tpu.memory_space<vmem>>, vector<16x128xf32>
    %c0_2 = arith.constant 0 : index
    %c0_3 = arith.constant 0 : index
    %4 = vector.load %arg3[%c0_2, %c0_3] : memref<16x128xf32, #tpu.memory_space<vmem>>, vector<16x128xf32>
    %c0_4 = arith.constant 0 : index
    %c0_5 = arith.constant 0 : index
    %5 = vector.load %arg4[%c0_4, %c0_5] : memref<128x128xf32, #tpu.memory_space<vmem>>, vector<128x128xf32>
    %cst = arith.constant dense<0.000000e+00> : vector<16x128xf32>
    %6 = tpu.matmul %4, %5, %cst {dimension_numbers = #tpu.dot_dimension_numbers<[1], [0], [0], [1], [0, 0, 1, 1], [], []>} : vector<16x128xf32>, vector<128x128xf32>, vector<16x128xf32> -> vector<16x128xf32>
    %7 = arith.addf %3, %6 : vector<16x128xf32>
    %c0_6 = arith.constant 0 : index
    %c0_7 = arith.constant 0 : index
    %8 = vector.load %arg7[%c0_6, %c0_7] : memref<16x128xf32, #tpu.memory_space<vmem>>, vector<16x128xf32>
    tpu.vector_store %arg7[%c0_6, %c0_7], %7 {strides = array<i32>} : memref<16x128xf32, #tpu.memory_space<vmem>>, vector<16x128xf32>,
    %c0_i32_8 = arith.constant 0 : i32
    %9 = arith.cmpi eq, %arg2, %c0_i32_8 : i32
    %10 = arith.extui %9 : i1 to i32
    %c0_i32_9 = arith.constant 0 : i32
    %11 = arith.cmpi ne, %10, %c0_i32_9 : i32
    scf.if %11 {
      %c0_10 = arith.constant 0 : index
      %c0_11 = arith.constant 0 : index
      %12 = vector.load %arg7[%c0_10, %c0_11] : memref<16x128xf32, #tpu.memory_space<vmem>>, vector<16x128xf32>
      %c0_12 = arith.constant 0 : index
      %c0_13 = arith.constant 0 : index
      %13 = vector.load %arg5[%c0_12, %c0_13] : memref<1x128xf32, #tpu.memory_space<vmem>>, vector<1x128xf32>
      %14 = vector.broadcast %13 : vector<1x128xf32> to vector<16x128xf32>
      %15 = arith.addf %12, %14 : vector<16x128xf32>
      %c0_14 = arith.constant 0 : index
      %c0_15 = arith.constant 0 : index
      %16 = vector.load %arg6[%c0_14, %c0_15] : memref<16x128xf32, #tpu.memory_space<vmem>>, vector<16x128xf32>
      tpu.vector_store %arg6[%c0_14, %c0_15], %15 {strides = array<i32>} : memref<16x128xf32, #tpu.memory_space<vmem>>, vector<16x128xf32>,
    } else {
    }
    return
  }
  func.func @transform_0(%arg0: i32, %arg1: i32, %arg2: i32) -> (i32, i32) {
    %c0_i32 = arith.constant 0 : i32
    return %arg0, %arg2 : i32, i32
  }
  func.func @transform_1(%arg0: i32, %arg1: i32, %arg2: i32) -> (i32, i32) {
    %c0_i32 = arith.constant 0 : i32
    return %arg2, %arg1 : i32, i32
  }
  func.func @transform_2(%arg0: i32, %arg1: i32, %arg2: i32) -> (i32, i32) {
    %c0_i32 = arith.constant 0 : i32
    %c0_i32_0 = arith.constant 0 : i32
    return %c0_i32, %arg1 : i32, i32
  }
  func.func @transform_3(%arg0: i32, %arg1: i32, %arg2: i32) -> (i32, i32) {
    %c0_i32 = arith.constant 0 : i32
    return %arg0, %arg1 : i32, i32
  }
}

</mosaic_0001>

<llo_original>
// kernel: tpu_custom_call.1
$region0: #{tpu_custom_call.1}
  #allocation0 [shape = 'u32[]', space=smem, size = 0x4, offset = 0x4, fixed_abs, tag = 'smem constant byte address 0x4 - core index']
  #allocation1 [shape = 'u32[144,128]{1,0:T(1,128)}', space=vmem, size = 0x12000, scoped, tag = 'internal scratch']
  #allocation2 [shape = 'f32[16,128]{1,0:T(8,128)}', space=vmem, size = 0x2000, scoped, tag = 'scratch operand']
  %s0 = inlined_call_operand.hbm [shape: f32[16,128], index: 0, kind: input, shape index: {}]
  %s1 = inlined_call_operand.hbm [shape: f32[128,256], index: 1, kind: input, shape index: {}]
  %s2 = inlined_call_operand.vmem [shape: f32[1,256], index: 2, kind: input, shape index: {}]
  %s3 = inlined_call_operand.hbm [shape: f32[16,256], index: 3, kind: output, shape index: {}]
  %s4 = sld [smem:[#allocation0]]
  $region61: #{tpu_custom_call.1} parent=0
    _
  %s6 = ssub.s32 1, %s4
  %s7 = scalar_select 0, %s6, %s4
  $region1: #{tpu_custom_call.1} parent=0
    #allocation3 [shape = 'u8[8192]{0}', space=vmem, size = 0x2000, scoped, tag = 'input window, operand 0, single buffered']
    #allocation4 [shape = 's32[2]{0}', space=sflag, size = 0x8, scoped, tag = 'scoped memory for tpu_custom_call.1']
    #allocation5 [shape = 's32[2]{0}', space=sflag, size = 0x8, scoped, tag = 'scoped memory for tpu_custom_call.1']
    #allocation6 [shape = 'u8[131072]{0}', space=vmem, size = 0x20000, scoped, tag = 'input window, operand 1']
    #allocation7 [shape = 's32[2]{0}', space=sflag, size = 0x8, scoped, tag = 'scoped memory for tpu_custom_call.1']
    #allocation8 [shape = 'u8[16384]{0}', space=vmem, size = 0x4000, scoped, tag = 'output window, operand 0']
    %8 = vsyncpa [#allocation4], 0
    %9 = vsyncpa [#allocation7], 0
    %s10 = scalar_lea.sflag [#allocation7], 1
    %11 = vsyncpa %s10, 0
    %12 = vsyncpa [#allocation5], 0
    %s13 = scalar_lea.sflag [#allocation5], 1
    %14 = vsyncpa %s13, 0
    loop: start=0, step=1, limit=4
    $region2: #{tpu_custom_call.1} parent=1 // loop_pre_header
      _
    $region3: #{tpu_custom_call.1} parent=1 // loop_header
      %s16 = sphi 0, %s20
      %p17 = scmp.ge.s32.totalorder %s16, 4
      %s23 = sphi 0, %s42
      %s24 = sphi 0, %s38
      %s25 = sphi 0, %s34
      %s26 = sphi 0, %s23
      %s27 = sphi 0, %s24
      %s28 = sphi 0, %s25
      %s29 = sphi 0, %s26
      %s30 = sphi 0, %s27
      %s31 = sphi 0, %s28
      %s47 = sphi 0, %s49
      %s50 = sphi 0, %s47
      %s51 = sphi 0, %s50
      %s67 = sphi 0, %s51
      %s75 = sphi 0, %s77
      %s78 = sphi 0, %s75
      %s79 = sphi 0, %s78
      %s95 = sphi 0, %s79
      %s101 = sphi 0, %s103
      %s104 = sphi 0, %s101
      %s105 = sphi 0, %s104
      %s121 = sphi 0, %s105
      %s129 = sphi 0, %s131
      %s132 = sphi 0, %s129
      %s133 = sphi 0, %s132
      %s149 = sphi 0, %s133
    $region4: #{tpu_custom_call.1} parent=1 // loop_header_branch
      %19 = sbr.rel (%p17) target = $region8
    $region5: #{tpu_custom_call.1} parent=1 // loop_body
      %s21 = ssub.s32 %s16, 1
      %s22 = ssub.s32 %s16, 2
      %s32 = sadd.s32 1, %s25
      %p33 = scmp.ge.s32.totalorder %s32, 1
      %s34 = scalar_select %p33, 0, %s32
      %s35 = sadd.s32 1, %s24
      %s36 = scalar_select %p33, %s35, %s24
      %p37 = scmp.ge.s32.totalorder %s36, 2
      %s38 = scalar_select %p37, 0, %s36
      %s39 = sadd.s32 1, %s23
      %s40 = scalar_select %p37, %s39, %s23
      %p41 = scmp.ge.s32.totalorder %s40, 1
      %s42 = scalar_select %p41, 0, %s40
      %s43 = ssub.s32 %s23, %s42
      %s44 = ssub.s32 %s25, %s34
      %s45 = sor.u32 %s43, %s44
      %p46 = scmp.eq.s32.totalorder %s45, 0
      %s48 = sadd.s32 %s47, 1
      %s49 = scalar_select %p46, %s47, %s48
      %p52 = pneg %p46
      %p53 = scmp.eq.s32.totalorder %s16, 1
      %p54 = por %p52, %p53
      %p55 = scmp.ne.s32.totalorder %s47, %s50
      %p56 = scmp.eq.s32.totalorder %s16, 0
      %p57 = por %p55, %p56
      %p58 = scmp.ne.s32.totalorder %s47, %s50
      %p59 = scmp.eq.s32.totalorder %s21, 1
      %p60 = por %p58, %p59
      %p61 = scmp.ne.s32.totalorder %s50, %s51
      %p62 = scmp.eq.s32.totalorder %s21, 0
      %p63 = por %p61, %p62
      %p64 = scmp.ne.s32.totalorder %s50, %s51
      %p65 = scmp.eq.s32.totalorder %s22, 1
      %p66 = por %p64, %p65
      %p68 = scmp.ne.s32.totalorder %s51, %s67
      %p69 = scmp.eq.s32.totalorder %s22, 0
      %p70 = por %p68, %p69
      %s71 = ssub.s32 %s25, %s34
      %s72 = ssub.s32 %s24, %s38
      %s73 = sor.u32 %s71, %s72
      %p74 = scmp.eq.s32.totalorder %s73, 0
      %s76 = sadd.s32 %s75, 1
      %s77 = scalar_select %p74, %s75, %s76
      %p80 = pneg %p74
      %p81 = scmp.eq.s32.totalorder %s16, 1
      %p82 = por %p80, %p81
      %p83 = scmp.ne.s32.totalorder %s75, %s78
      %p84 = scmp.eq.s32.totalorder %s16, 0
      %p85 = por %p83, %p84
      %p86 = scmp.ne.s32.totalorder %s75, %s78
      %p87 = scmp.eq.s32.totalorder %s21, 1
      %p88 = por %p86, %p87
      %p89 = scmp.ne.s32.totalorder %s78, %s79
      %p90 = scmp.eq.s32.totalorder %s21, 0
      %p91 = por %p89, %p90
      %p92 = scmp.ne.s32.totalorder %s78, %s79
      %p93 = scmp.eq.s32.totalorder %s22, 1
      %p94 = por %p92, %p93
      %p96 = scmp.ne.s32.totalorder %s79, %s95
      %p97 = scmp.eq.s32.totalorder %s22, 0
      %p98 = por %p96, %p97
      %s99 = ssub.s32 %s24, %s38
      %p100 = scmp.eq.s32.totalorder %s99, 0
      %s102 = sadd.s32 %s101, 1
      %s103 = scalar_select %p100, %s101, %s102
      %p106 = pneg %p100
      %p107 = scmp.eq.s32.totalorder %s16, 1
      %p108 = por %p106, %p107
      %p109 = scmp.ne.s32.totalorder %s101, %s104
      %p110 = scmp.eq.s32.totalorder %s16, 0
      %p111 = por %p109, %p110
      %p112 = scmp.ne.s32.totalorder %s101, %s104
      %p113 = scmp.eq.s32.totalorder %s21, 1
      %p114 = por %p112, %p113
      %p115 = scmp.ne.s32.totalorder %s104, %s105
      %p116 = scmp.eq.s32.totalorder %s21, 0
      %p117 = por %p115, %p116
      %p118 = scmp.ne.s32.totalorder %s104, %s105
      %p119 = scmp.eq.s32.totalorder %s22, 1
      %p120 = por %p118, %p119
      %p122 = scmp.ne.s32.totalorder %s105, %s121
      %p123 = scmp.eq.s32.totalorder %s22, 0
      %p124 = por %p122, %p123
      %s125 = ssub.s32 %s23, %s42
      %s126 = ssub.s32 %s24, %s38
      %s127 = sor.u32 %s125, %s126
      %p128 = scmp.eq.s32.totalorder %s127, 0
      %s130 = sadd.s32 %s129, 1
      %s131 = scalar_select %p128, %s129, %s130
      %p134 = pneg %p128
      %p135 = scmp.eq.s32.totalorder %s16, 1
      %p136 = por %p134, %p135
      %p137 = scmp.ne.s32.totalorder %s129, %s132
      %p138 = scmp.eq.s32.totalorder %s16, 0
      %p139 = por %p137, %p138
      %p140 = scmp.ne.s32.totalorder %s129, %s132
      %p141 = scmp.eq.s32.totalorder %s21, 1
      %p142 = por %p140, %p141
      %p143 = scmp.ne.s32.totalorder %s132, %s133
      %p144 = scmp.eq.s32.totalorder %s21, 0
      %p145 = por %p143, %p144
      %p146 = scmp.ne.s32.totalorder %s132, %s133
      %p147 = scmp.eq.s32.totalorder %s22, 1
      %p148 = por %p146, %p147
      %p150 = scmp.ne.s32.totalorder %s133, %s149
      %p151 = scmp.eq.s32.totalorder %s22, 0
      %p152 = por %p150, %p151
      %p153 = scmp.le.s32.totalorder 1, %s16
      %p154 = scmp.lt.s32.totalorder %s16, 3
      %p155 = pnand %p153, %p154
      %p156 = pneg %p155
      // Predicated region
      $region9: #{tpu_custom_call.1} parent=5 // pred_check
        _
      $region10: #{tpu_custom_call.1} parent=5 // pred_check_branch
        %158 = sbr.rel (%p155) target = $region12
      $region11: #{tpu_custom_call.1} parent=5 // pred_region
        %s159 = ssub.s32 %s16, 1
        // Predicated region
        $region13: #{tpu_custom_call.1} parent=11 // pred_check
          %p160 = pneg %p63
        $region14: #{tpu_custom_call.1} parent=11 // pred_check_branch
          %162 = sbr.rel (%p160) target = $region16
        $region15: #{tpu_custom_call.1} parent=11 // pred_region
          %s163 = smul.u32 2, %s26
          %s165 = ssub.s32 256, 256
          %166 = vsyncadd [#allocation4], %s165
          %s167 = sadd.s32 %s28, %s163
          %s168 = smul.addr %s167, 128
          %s169 = scalar_lea.hbm %s0, %s168
          %s170 = sshll.u32 [#allocation3], 4
          %s171 = int_to_ptr.vmem [resolvable:$true] %s170
          %176 = dma.hbm_to_vmem [thread:$0]  %s169, 256, %s171, [#allocation4], 128, 128, 8
        $region16: #{tpu_custom_call.1} parent=11 // pred_fallthru
          _
      $region12: #{tpu_custom_call.1} parent=5 // pred_fallthru
        _
      %p177 = scmp.lt.s32.totalorder %s16, 2
      // Predicated region
      $region17: #{tpu_custom_call.1} parent=5 // pred_check
        %p178 = pneg %p177
      $region18: #{tpu_custom_call.1} parent=5 // pred_check_branch
        %180 = sbr.rel (%p178) target = $region20
      $region19: #{tpu_custom_call.1} parent=5 // pred_region
        // Predicated region
        $region21: #{tpu_custom_call.1} parent=19 // pred_check
          %p181 = pneg %p85
        $region22: #{tpu_custom_call.1} parent=19 // pred_check_branch
          %183 = sbr.rel (%p181) target = $region24
        $region23: #{tpu_custom_call.1} parent=19 // pred_region
          %s184 = sand.u32 %s75, 1
          %s185 = scalar_lea.sflag [#allocation7], %s184
          %s186 = sand.u32 %s75, 1
          %s187 = smul.addr %s186, 128
          %s188 = scalar_lea.vmem [#allocation6], %s187
          %s189 = smul.u32 16, %s25
          %s191 = ssub.s32 2048, 2048
          %192 = vsyncadd %s185, %s191
          %s193 = smul.addr %s189, 2
          %s194 = sadd.s32 %s24, %s193
          %s195 = smul.addr %s194, 128
          %s196 = scalar_lea.hbm %s1, %s195
          %s197 = sshll.u32 %s188, 4
          %s198 = int_to_ptr.vmem [resolvable:$true] %s197
          %203 = dma.hbm_to_vmem [thread:$0]  %s196, 2048, %s198, %s185, 256, 128, 8
        $region24: #{tpu_custom_call.1} parent=19 // pred_fallthru
          _
        // Predicated region
        $region25: #{tpu_custom_call.1} parent=19 // pred_check
          %p204 = pneg %p111
        $region26: #{tpu_custom_call.1} parent=19 // pred_check_branch
          %206 = sbr.rel (%p204) target = $region28
        $region27: #{tpu_custom_call.1} parent=19 // pred_region
          %p207 = scmp.lt.s32.totalorder %s24, 1
          %s208 = scalar_select %p207, %s24, 1
          %s209 = scalar_lea.vmem %s2, %s208
        $region28: #{tpu_custom_call.1} parent=19 // pred_fallthru
          _
      $region20: #{tpu_custom_call.1} parent=5 // pred_fallthru
        _
      %p210 = scmp.le.s32.totalorder 1, %s16
      %p211 = scmp.lt.s32.totalorder %s16, 3
      %p212 = pnand %p210, %p211
      %p213 = pneg %p212
      // Predicated region
      $region29: #{tpu_custom_call.1} parent=5 // pred_check
        _
      $region30: #{tpu_custom_call.1} parent=5 // pred_check_branch
        %215 = sbr.rel (%p212) target = $region32
      $region31: #{tpu_custom_call.1} parent=5 // pred_region
        %s216 = ssub.s32 %s16, 1
        // Predicated region
        $region33: #{tpu_custom_call.1} parent=31 // pred_check
          %p217 = pneg %p63
        $region34: #{tpu_custom_call.1} parent=31 // pred_check_branch
          %219 = sbr.rel (%p217) target = $region36
        $region35: #{tpu_custom_call.1} parent=31 // pred_region
          %220 = dma.done [#allocation4], 256
        $region36: #{tpu_custom_call.1} parent=31 // pred_fallthru
          _
        %s221 = sand.u32 %s78, 1
        %s222 = scalar_lea.sflag [#allocation7], %s221
        %s223 = sand.u32 %s78, 1
        %s224 = smul.addr %s223, 128
        %s225 = scalar_lea.vmem [#allocation6], %s224
        // Predicated region
        $region37: #{tpu_custom_call.1} parent=31 // pred_check
          %p226 = pneg %p91
        $region38: #{tpu_custom_call.1} parent=31 // pred_check_branch
          %228 = sbr.rel (%p226) target = $region40
        $region39: #{tpu_custom_call.1} parent=31 // pred_region
          %229 = dma.done %s222, 2048
        $region40: #{tpu_custom_call.1} parent=31 // pred_fallthru
          _
        %p230 = pneg %p63
        %p231 = pneg %p60
        %s232 = sand.u32 %s78, 1
        %s233 = scalar_lea.sflag [#allocation7], %s232
        %s234 = sand.u32 %s78, 1
        %s235 = smul.addr %s234, 128
        %s236 = scalar_lea.vmem [#allocation6], %s235
        %p237 = pneg %p91
        %p238 = pneg %p88
        %p239 = scmp.lt.s32.totalorder %s27, 1
        %s240 = scalar_select %p239, %s27, 1
        %s241 = scalar_lea.vmem %s2, %s240
        %p242 = pneg %p117
        %p243 = pneg %p114
        %p244 = pneg %p145
        %p245 = pneg %p142
        %s246 = sand.u32 %s132, 1
        %s247 = scalar_lea.sflag [#allocation5], %s246
        %s248 = sand.u32 %s132, 1
        %s249 = smul.addr %s248, 16
        %s250 = scalar_lea.vmem [#allocation8], %s249
        %s251 = smul.u32 2, %s26
        %s252 = smul.u32 16, %s28
        %p253 = scmp.lt.s32.totalorder %s27, 1
        %s254 = scalar_select %p253, %s27, 1
        %s255 = scalar_lea.vmem %s2, %s254
        %s256 = smul.u32 2, %s26
        %p257 = scmp.eq.s32.totalorder %s28, 0
        // Predicated region
        $region41: #{tpu_custom_call.1} parent=31 // pred_check
          %p258 = pneg %p257
        $region42: #{tpu_custom_call.1} parent=31 // pred_check_branch
          %260 = sbr.rel (%p258) target = $region44
        $region43: #{tpu_custom_call.1} parent=31 // pred_region
          %261 = vst [vmem:[#allocation2] sm:$0xff] 0.0
          %262 = vst [vmem:[#allocation2 + $0x8] sm:$0xff] 0.0
        $region44: #{tpu_custom_call.1} parent=31 // pred_fallthru
          _
        %v263 = vld [vmem:[#allocation2] sm:$0xff]
        %v264 = vld [vmem:[#allocation2 + $0x8] sm:$0xff]
        %v265 = vld [vmem:[#allocation3] sm:$0xff]
        %v266 = vld [vmem:[#allocation3 + $0x8] sm:$0xff]
        %v267 = vld [vmem:[%s225] sm:$0xff]
        %v268 = vld [vmem:[%s225 + $0x8] sm:$0xff]
        %v269 = vld [vmem:[%s225 + $0x10] sm:$0xff]
        %v270 = vld [vmem:[%s225 + $0x18] sm:$0xff]
        %v271 = vld [vmem:[%s225 + $0x20] sm:$0xff]
        %v272 = vld [vmem:[%s225 + $0x28] sm:$0xff]
        %v273 = vld [vmem:[%s225 + $0x30] sm:$0xff]
        %v274 = vld [vmem:[%s225 + $0x38] sm:$0xff]
        %v275 = vld [vmem:[%s225 + $0x40] sm:$0xff]
        %v276 = vld [vmem:[%s225 + $0x48] sm:$0xff]
        %v277 = vld [vmem:[%s225 + $0x50] sm:$0xff]
        %v278 = vld [vmem:[%s225 + $0x58] sm:$0xff]
        %v279 = vld [vmem:[%s225 + $0x60] sm:$0xff]
        %v280 = vld [vmem:[%s225 + $0x68] sm:$0xff]
        %v281 = vld [vmem:[%s225 + $0x70] sm:$0xff]
        %v282 = vld [vmem:[%s225 + $0x78] sm:$0xff]
        %283 = vmatprep.subr.mxu0 0.0
        %284 = vmatpush1.msra.mxu0 %v267
        %285 = vmatprep.subr.mxu0 0.0
        %286 = vmatpush1.msra.mxu0 %v268
        %287 = vmatprep.subr.mxu0 0.0
        %288 = vmatpush1.msra.mxu0 %v269
        %289 = vmatprep.subr.mxu0 0.0
        %290 = vmatpush1.msra.mxu0 %v270
        %291 = vmatprep.subr.mxu0 0.0
        %292 = vmatpush1.msra.mxu0 %v271
        %293 = vmatprep.subr.mxu0 0.0
        %294 = vmatpush1.msra.mxu0 %v272
        %295 = vmatprep.subr.mxu0 0.0
        %296 = vmatpush1.msra.mxu0 %v273
        %297 = vmatprep.subr.mxu0 0.0
        %298 = vmatpush1.msra.mxu0 %v274
        %299 = vmatprep.subr.mxu0 0.0
        %300 = vmatpush1.msra.mxu0 %v275
        %301 = vmatprep.subr.mxu0 0.0
        %302 = vmatpush1.msra.mxu0 %v276
        %303 = vmatprep.subr.mxu0 0.0
        %304 = vmatpush1.msra.mxu0 %v277
        %305 = vmatprep.subr.mxu0 0.0
        %306 = vmatpush1.msra.mxu0 %v278
        %307 = vmatprep.subr.mxu0 0.0
        %308 = vmatpush1.msra.mxu0 %v279
        %309 = vmatprep.subr.mxu0 0.0
        %310 = vmatpush1.msra.mxu0 %v280
        %311 = vmatprep.subr.mxu0 0.0
        %312 = vmatpush1.msra.mxu0 %v281
        %313 = vmatprep.subr.mxu0 0.0
        %314 = vmatpush1.msra.mxu0 %v282
        %315 = vmatprep.subr.mxu0 0.0
        %316 = vmatpush1.msra.mxu0 0.0
        %317 = vmatprep.subr.mxu0 0.0
        %318 = vmatpush1.msra.mxu0 0.0
        %319 = vmatprep.subr.mxu0 0.0
        %320 = vmatpush1.msra.mxu0 0.0
        %321 = vmatprep.subr.mxu0 0.0
        %322 = vmatpush1.msra.mxu0 0.0
        %323 = vmatprep.subr.mxu0 0.0
        %324 = vmatpush1.msra.mxu0 0.0
        %325 = vmatprep.subr.mxu0 0.0
        %326 = vmatpush1.msra.mxu0 0.0
        %327 = vmatprep.subr.mxu0 0.0
        %328 = vmatpush1.msra.mxu0 0.0
        %329 = vmatprep.subr.mxu0 0.0
        %330 = vmatpush1.msra.mxu0 0.0
        %331 = vmatprep.subr.mxu0 0.0
        %332 = vmatpush1.msra.mxu0 0.0
        %333 = vmatprep.subr.mxu0 0.0
        %334 = vmatpush1.msra.mxu0 0.0
        %335 = vmatprep.subr.mxu0 0.0
        %336 = vmatpush1.msra.mxu0 0.0
        %337 = vmatprep.subr.mxu0 0.0
        %338 = vmatpush1.msra.mxu0 0.0
        %339 = vmatprep.subr.mxu0 0.0
        %340 = vmatpush1.msra.mxu0 0.0
        %341 = vmatprep.subr.mxu0 0.0
        %342 = vmatpush1.msra.mxu0 0.0
        %343 = vmatprep.subr.mxu0 0.0
        %344 = vmatpush1.msra.mxu0 0.0
        %345 = vmatprep.subr.mxu0 0.0
        %346 = vmatpush1.msra.mxu0 0.0
        %347 = vmatprep.mubr.f32.mxu0 0.0
        %348 = vmatmul.mubr.f32.gmra.mrb[0].mxu0 %v265
        %v349 = vpop.f32.mrb[0].mxu0
        %v350 = vadd.f32 0.0, %v349
        %v351 = vpop.f32.mrb[0].mxu0
        %352 = vmatprep.mubr.f32.mxu0 0.0
        %353 = vmatmul.mubr.f32.gmra.mrb[0].mxu0 %v266
        %v354 = vpop.f32.mrb[0].mxu0
        %v355 = vadd.f32 0.0, %v354
        %v356 = vpop.f32.mrb[0].mxu0
        %357 = vdwg.mxu0
        %v358 = vadd.f32 %v263, %v350
        %v359 = vadd.f32 %v264, %v355
        %360 = vst [vmem:[#allocation2] sm:$0xff] %v358
        %361 = vst [vmem:[#allocation2 + $0x8] sm:$0xff] %v359
        // Predicated region
        $region45: #{tpu_custom_call.1} parent=31 // pred_check
          %p362 = pneg %p257
        $region46: #{tpu_custom_call.1} parent=31 // pred_check_branch
          %364 = sbr.rel (%p362) target = $region48
        $region47: #{tpu_custom_call.1} parent=31 // pred_region
          %v365 = vld [vmem:[#allocation2] sm:$0xff]
          %v366 = vld [vmem:[#allocation2 + $0x8] sm:$0xff]
          %v367 = vld [vmem:[%s255] sm:$0x1]
          %v369 = vlaneseq
          %v370 = vshrl.u32 %v369, 7
          %v371 = vsub.s32 0, %v370
          %v372 = vrot.slane %v367, %v371
          %v374 = vadd.f32 %v365, %v372
          %v375 = vadd.f32 %v366, %v372
          %376 = vst [vmem:[%s250] sm:$0xff] %v374
          %377 = vst [vmem:[%s250 + $0x8] sm:$0xff] %v375
        $region48: #{tpu_custom_call.1} parent=31 // pred_fallthru
          _
        %s378 = sand.u32 %s132, 1
        %s379 = scalar_lea.sflag [#allocation5], %s378
        %s380 = sand.u32 %s132, 1
        %s381 = smul.addr %s380, 16
        %s382 = scalar_lea.vmem [#allocation8], %s381
        // Predicated region
        $region49: #{tpu_custom_call.1} parent=31 // pred_check
          %p383 = pneg %p142
        $region50: #{tpu_custom_call.1} parent=31 // pred_check_branch
          %385 = sbr.rel (%p383) target = $region52
        $region51: #{tpu_custom_call.1} parent=31 // pred_region
          %s386 = smul.u32 2, %s26
          %s388 = ssub.s32 256, 256
          %389 = vsyncadd %s379, %s388
          %s390 = smul.addr %s386, 2
          %s391 = sadd.s32 %s27, %s390
          %s392 = smul.addr %s391, 128
          %s393 = scalar_lea.hbm %s3, %s392
          %s394 = sshll.u32 %s382, 4
          %s395 = int_to_ptr.vmem [resolvable:$true] %s394
          %400 = dma.vmem_to_hbm [thread:$0]  %s395, 256, %s393, %s379, 128, 256, 8
        $region52: #{tpu_custom_call.1} parent=31 // pred_fallthru
          _
      $region32: #{tpu_custom_call.1} parent=5 // pred_fallthru
        _
      %p401 = scmp.le.s32.totalorder 2, %s16
      // Predicated region
      $region53: #{tpu_custom_call.1} parent=5 // pred_check
        %p402 = pneg %p401
      $region54: #{tpu_custom_call.1} parent=5 // pred_check_branch
        %404 = sbr.rel (%p402) target = $region56
      $region55: #{tpu_custom_call.1} parent=5 // pred_region
        %s405 = ssub.s32 %s16, 2
        // Predicated region
        $region57: #{tpu_custom_call.1} parent=55 // pred_check
          %p406 = pneg %p148
        $region58: #{tpu_custom_call.1} parent=55 // pred_check_branch
          %408 = sbr.rel (%p406) target = $region60
        $region59: #{tpu_custom_call.1} parent=55 // pred_region
          %s409 = sand.u32 %s133, 1
          %s410 = scalar_lea.sflag [#allocation5], %s409
          %s411 = sand.u32 %s133, 1
          %s412 = smul.addr %s411, 16
          %s413 = scalar_lea.vmem [#allocation8], %s412
          %414 = dma.done %s410, 256
        $region60: #{tpu_custom_call.1} parent=55 // pred_fallthru
          _
      $region56: #{tpu_custom_call.1} parent=5 // pred_fallthru
        _
    $region6: #{tpu_custom_call.1} parent=1 // loop_footer
      %s20 = sadd.s32 1, %s16
    $region7: #{tpu_custom_call.1} parent=1 // loop_footer_branch
      %15 = sbr.rel target = $region3
    $region8: #{tpu_custom_call.1} parent=1 // loop_exit
      _
    %415 = vsyncpa [#allocation4], 1
    %s416 = scalar_lea.sflag [#allocation4], 1
    %417 = vsyncpa %s416, 1
    %418 = vsyncpa [#allocation7], 1
    %s419 = scalar_lea.sflag [#allocation7], 1
    %420 = vsyncpa %s419, 1
    %421 = vsyncpa [#allocation5], 1
    %s422 = scalar_lea.sflag [#allocation5], 1
    %423 = vsyncpa %s422, 1

</llo_original>
